<compile_context>
chip_gen: v7x
topology: tpu7x:2x2x1
jax: 0.10.0
libtpu: 0.0.40
codegen_flags: <defaults>
</compile_context>

<pallas_src>
import functools

import jax
import jax.numpy as jnp
from jax.experimental import pallas as pl
from jax.experimental.pallas import tpu as pltpu


def _se_kernel(x_ref, w1_ref, b1_ref, w2_ref, b2_ref, out_ref, *, inv_len):
    """One batch tile of SEBlock.

    x_ref  : (TB, C, Lp)  input tile (NCL layout, padded L on the lane axis)
    w1_ref : (C, H)       squeeze weight (pre-transposed Linear(C -> H))
    b1_ref : (1, H)
    w2_ref : (H, C)       excite weight  (pre-transposed Linear(H -> C))
    b2_ref : (1, C)
    out_ref: (TB, C, Lp)
    """
    # --- squeeze: global average pool over L (f32 accumulation; L-padding is zeros) ---
    pooled = jnp.sum(x_ref[...].astype(jnp.float32), axis=-1) * inv_len      # (TB, C)

    # --- Linear(C -> H) + ReLU ---
    h = jnp.dot(pooled, w1_ref[...], preferred_element_type=jnp.float32) + b1_ref[...]
    h = jnp.maximum(h, 0.0)                                                   # (TB, H)

    # --- Linear(H -> C) + Sigmoid ---
    g = jnp.dot(h, w2_ref[...], preferred_element_type=jnp.float32) + b2_ref[...]
    gate = jax.nn.sigmoid(g)                                                  # (TB, C)

    # --- excite: re-read the VMEM ref (don't keep the tile live across the matmuls);
    #     multiply in f32 (v5e VPU has no bf16), store in the I/O dtype.
    out_ref[...] = (x_ref[...].astype(jnp.float32) * gate[:, :, None]).astype(out_ref.dtype)


def _vmem_capacity_bytes():
    try:
        return int(pltpu.get_tpu_info().vmem_capacity_bytes)
    except Exception:
        return 64 * 1024 * 1024  # conservative (v7x per-TC)


def se_block_forward(x, w1, b1, w2, b2, *, batch_tile=None):
    """x: (N, C, L) with L == input_size (AvgPool1d(input_size) == global avg pool).

    w1: (H, C)  b1: (H,)   -- PyTorch Linear(no_chans, 128) layout
    w2: (C, H)  b2: (C,)   -- PyTorch Linear(128, no_chans) layout
    Returns (N, C, L).
    """
    N, C, L = x.shape
    H = w1.shape[0]
    assert w1.shape == (H, C), w1.shape
    assert w2.shape == (C, H), w2.shape

    itemsize = jnp.dtype(x.dtype).itemsize

    # --- lane-dense L: pad with zeros to a multiple of 128 (pooled mean uses real L) ---
    Lp = ((L + 127) // 128) * 128
    x_p = x if Lp == L else jnp.pad(x, ((0, 0), (0, 0), (0, Lp - L)))

    # --- block sizing from the chip's VMEM ---
    vmem_cap = _vmem_capacity_bytes()
    per_sample_bytes = C * Lp * itemsize
    # x + out blocks, each double-buffered -> ~4 resident copies of one block.
    block_target = min(16 * 1024 * 1024, max(1, vmem_cap // 8))
    if per_sample_bytes > block_target and 4 * per_sample_bytes > (vmem_cap * 3) // 4:
        raise ValueError(
            f"SEBlock sample footprint {per_sample_bytes} B too large for VMEM "
            f"({vmem_cap} B); an L-tiled variant is required for this shape.")

    if batch_tile is None:
        batch_tile = max(1, block_target // max(1, per_sample_bytes))
    # Keep >= 2 grid steps so "parallel" can shard across v7x's two TensorCores.
    batch_tile = max(1, min(batch_tile, pl.cdiv(N, 2) if N >= 2 else N))
    TB = int(batch_tile)
    grid = (pl.cdiv(N, TB),)

    # Pre-transpose weights once so the kernel does row-major matmuls with the
    # contraction on the lane axis; biases pre-shaped to rows.
    w1_t = jnp.transpose(w1)                # (C, H)
    w2_t = jnp.transpose(w2)                # (H, C)
    b1_r = b1.reshape(1, H).astype(jnp.float32)
    b2_r = b2.reshape(1, C).astype(jnp.float32)

    kernel = functools.partial(_se_kernel, inv_len=1.0 / L)

    tile_map = lambda n: (n, 0, 0)          # x / out tiles walk the batch axis
    const_map = lambda n: (0, 0)            # weights stay resident in VMEM

    # VMEM budget tied to the actual footprint (4 block copies + params + slack).
    block_bytes = TB * C * Lp * itemsize
    weight_bytes = (w1_t.size + w2_t.size + b1_r.size + b2_r.size) * 4
    vmem_limit = int(min(vmem_cap, max(16 * 1024 * 1024,
                                       4 * block_bytes + weight_bytes + 4 * 1024 * 1024)))

    cost = pl.CostEstimate(
        flops=2 * N * C * H * 2 + 2 * N * C * L,          # two GEMMs + pool + rescale
        transcendentals=N * C,                            # sigmoid
        bytes_accessed=2 * N * C * L * itemsize + weight_bytes,
    )

    out_p = pl.pallas_call(
        kernel,
        out_shape=jax.ShapeDtypeStruct((N, C, Lp), x.dtype),
        grid=grid,
        in_specs=[
            pl.BlockSpec((TB, C, Lp), tile_map),
            pl.BlockSpec((C, H), const_map),
            pl.BlockSpec((1, H), const_map),
            pl.BlockSpec((H, C), const_map),
            pl.BlockSpec((1, C), const_map),
        ],
        out_specs=pl.BlockSpec((TB, C, Lp), tile_map),
        compiler_params=pltpu.CompilerParams(
            dimension_semantics=("parallel",),
            vmem_limit_bytes=vmem_limit,
        ),
        cost_estimate=cost,
    )(x_p, w1_t, b1_r, w2_t, b2_r)

    return out_p if Lp == L else out_p[:, :, :L]


# ---------------------------------------------------------------------------
# Pure-JAX reference (mirrors the PyTorch forward)
# ---------------------------------------------------------------------------
def reference_forward(x, w1, b1, w2, b2):
    pooled = jnp.mean(x, axis=-1)                       # AvgPool1d(L) + Flatten
    h = jnp.maximum(pooled @ w1.T + b1, 0.0)            # Linear + ReLU
    gate = jax.nn.sigmoid(h @ w2.T + b2)                # Linear + Sigmoid
    return x * gate[:, :, None]                         # identity * gate


if __name__ == "__main__":
    # Small shapes consistent with the module: batch=4, no_chans=32, input_size=128.
    N, C, L, H = 4, 32, 128, 128

    key = jax.random.PRNGKey(0)
    kx, k1, k2, k3, k4 = jax.random.split(key, 5)
    x = jax.random.normal(kx, (N, C, L), jnp.float32)

    # Parameters in PyTorch nn.Linear layout: W (out, in), b (out,).
    w1 = jax.random.normal(k1, (H, C), jnp.float32) * (1.0 / jnp.sqrt(C))
    b1 = jax.random.normal(k2, (H,), jnp.float32) * 0.1
    w2 = jax.random.normal(k3, (C, H), jnp.float32) * (1.0 / jnp.sqrt(H))
    b2 = jax.random.normal(k4, (C,), jnp.float32) * 0.1

    out = se_block_forward(x, w1, b1, w2, b2)
    out = jax.block_until_ready(out)

    ref = reference_forward(x, w1, b1, w2, b2)
    assert out.shape == (N, C, L), out.shape
    assert jnp.allclose(out, ref, atol=1e-5, rtol=1e-5), \
        float(jnp.max(jnp.abs(out - ref)))

    # Sanity-check an awkward batch / non-128 length (partial last block + L padding).
    N2, L2 = 3, 100
    x2 = jax.random.normal(kx, (N2, C, L2), jnp.float32)
    out2 = jax.block_until_ready(se_block_forward(x2, w1, b1, w2, b2))
    ref2 = reference_forward(x2, w1, b1, w2, b2)
    assert jnp.allclose(out2, ref2, atol=1e-5, rtol=1e-5), \
        float(jnp.max(jnp.abs(out2 - ref2)))

    print("KERNEL_OK")
</pallas_src>

<mosaic_0001>
module attributes {stable_mosaic.version = 11 : i64} {
  func.func @_se_kernel(%arg0: i32, %arg1: memref<2x32x128xf32, #tpu.memory_space<vmem>>, %arg2: memref<32x128xf32, #tpu.memory_space<vmem>>, %arg3: memref<1x128xf32, #tpu.memory_space<vmem>>, %arg4: memref<128x32xf32, #tpu.memory_space<vmem>>, %arg5: memref<1x32xf32, #tpu.memory_space<vmem>>, %arg6: memref<2x32x128xf32, #tpu.memory_space<vmem>>) attributes {dimension_semantics = [#tpu.dimension_semantics<parallel>], iteration_bounds = array<i64: 2>, scalar_prefetch = 0 : i64, scratch_operands = 0 : i64, tpu.core_type = #tpu.core_type<tc>, window_params = [{transform_indices = @transform_0, window_bounds = array<i64: 2, 32, 128>}, {pipeline_mode = #tpu.pipeline_mode<synchronous>, transform_indices = @transform_1, window_bounds = array<i64: 32, 128>}, {pipeline_mode = #tpu.pipeline_mode<synchronous>, transform_indices = @transform_2, window_bounds = array<i64: 1, 128>}, {pipeline_mode = #tpu.pipeline_mode<synchronous>, transform_indices = @transform_3, window_bounds = array<i64: 128, 32>}, {pipeline_mode = #tpu.pipeline_mode<synchronous>, transform_indices = @transform_4, window_bounds = array<i64: 1, 32>}, {transform_indices = @transform_5, window_bounds = array<i64: 2, 32, 128>}]} {
    %c0 = arith.constant 0 : index
    %c0_0 = arith.constant 0 : index
    %c0_1 = arith.constant 0 : index
    %0 = vector.load %arg1[%c0, %c0_0, %c0_1] : memref<2x32x128xf32, #tpu.memory_space<vmem>>, vector<2x32x128xf32>
    %cst = arith.constant dense<0.000000e+00> : vector<2x32xf32>
    %1 = vector.multi_reduction <add>, %0, %cst [2] : vector<2x32x128xf32> to vector<2x32xf32>
    %cst_2 = arith.constant 7.812500e-03 : f32
    %2 = vector.broadcast %cst_2 : f32 to vector<2x32xf32>
    %3 = arith.mulf %1, %2 : vector<2x32xf32>
    %c0_3 = arith.constant 0 : index
    %c0_4 = arith.constant 0 : index
    %4 = vector.load %arg2[%c0_3, %c0_4] : memref<32x128xf32, #tpu.memory_space<vmem>>, vector<32x128xf32>
    %cst_5 = arith.constant dense<0.000000e+00> : vector<2x128xf32>
    %5 = tpu.matmul %3, %4, %cst_5 {dimension_numbers = #tpu.dot_dimension_numbers<[1], [0], [0], [1], [0, 0, 1, 1], [], []>} : vector<2x32xf32>, vector<32x128xf32>, vector<2x128xf32> -> vector<2x128xf32>
    %c0_6 = arith.constant 0 : index
    %c0_7 = arith.constant 0 : index
    %6 = vector.load %arg3[%c0_6, %c0_7] : memref<1x128xf32, #tpu.memory_space<vmem>>, vector<1x128xf32>
    %7 = vector.broadcast %6 : vector<1x128xf32> to vector<2x128xf32>
    %8 = arith.addf %5, %7 : vector<2x128xf32>
    %cst_8 = arith.constant 0.000000e+00 : f32
    %9 = vector.broadcast %cst_8 : f32 to vector<2x128xf32>
    %10 = arith.maximumf %8, %9 : vector<2x128xf32>
    %c0_9 = arith.constant 0 : index
    %c0_10 = arith.constant 0 : index
    %11 = vector.load %arg4[%c0_9, %c0_10] : memref<128x32xf32, #tpu.memory_space<vmem>>, vector<128x32xf32>
    %cst_11 = arith.constant dense<0.000000e+00> : vector<2x32xf32>
    %12 = tpu.matmul %10, %11, %cst_11 {dimension_numbers = #tpu.dot_dimension_numbers<[1], [0], [0], [1], [0, 0, 1, 1], [], []>} : vector<2x128xf32>, vector<128x32xf32>, vector<2x32xf32> -> vector<2x32xf32>
    %c0_12 = arith.constant 0 : index
    %c0_13 = arith.constant 0 : index
    %13 = vector.load %arg5[%c0_12, %c0_13] : memref<1x32xf32, #tpu.memory_space<vmem>>, vector<1x32xf32>
    %14 = vector.broadcast %13 : vector<1x32xf32> to vector<2x32xf32>
    %15 = arith.addf %12, %14 : vector<2x32xf32>
    %16 = arith.negf %15 : vector<2x32xf32>
    %17 = math.exp %16 : vector<2x32xf32>
    %cst_14 = arith.constant 1.000000e+00 : f32
    %18 = vector.broadcast %cst_14 : f32 to vector<2x32xf32>
    %19 = arith.addf %18, %17 : vector<2x32xf32>
    %20 = arith.divf %18, %19 : vector<2x32xf32>
    %c0_15 = arith.constant 0 : index
    %c0_16 = arith.constant 0 : index
    %c0_17 = arith.constant 0 : index
    %21 = vector.load %arg1[%c0_15, %c0_16, %c0_17] : memref<2x32x128xf32, #tpu.memory_space<vmem>>, vector<2x32x128xf32>
    %22 = vector.shape_cast %20 : vector<2x32xf32> to vector<2x32x1xf32>
    %23 = vector.broadcast %22 : vector<2x32x1xf32> to vector<2x32x128xf32>
    %24 = arith.mulf %21, %23 : vector<2x32x128xf32>
    %c0_18 = arith.constant 0 : index
    %c0_19 = arith.constant 0 : index
    %c0_20 = arith.constant 0 : index
    %25 = vector.load %arg6[%c0_18, %c0_19, %c0_20] : memref<2x32x128xf32, #tpu.memory_space<vmem>>, vector<2x32x128xf32>
    tpu.vector_store %arg6[%c0_18, %c0_19, %c0_20], %24 {strides = array<i32>} : memref<2x32x128xf32, #tpu.memory_space<vmem>>, vector<2x32x128xf32>,
    return
  }
  func.func @transform_0(%arg0: i32) -> (i32, i32, i32) {
    %c0_i32 = arith.constant 0 : i32
    %c0_i32_0 = arith.constant 0 : i32
    %c0_i32_1 = arith.constant 0 : i32
    return %arg0, %c0_i32, %c0_i32_0 : i32, i32, i32
  }
  func.func @transform_1(%arg0: i32) -> (i32, i32) {
    %c0_i32 = arith.constant 0 : i32
    %c0_i32_0 = arith.constant 0 : i32
    %c0_i32_1 = arith.constant 0 : i32
    return %c0_i32, %c0_i32_0 : i32, i32
  }
  func.func @transform_2(%arg0: i32) -> (i32, i32) {
    %c0_i32 = arith.constant 0 : i32
    %c0_i32_0 = arith.constant 0 : i32
    %c0_i32_1 = arith.constant 0 : i32
    return %c0_i32, %c0_i32_0 : i32, i32
  }
  func.func @transform_3(%arg0: i32) -> (i32, i32) {
    %c0_i32 = arith.constant 0 : i32
    %c0_i32_0 = arith.constant 0 : i32
    %c0_i32_1 = arith.constant 0 : i32
    return %c0_i32, %c0_i32_0 : i32, i32
  }
  func.func @transform_4(%arg0: i32) -> (i32, i32) {
    %c0_i32 = arith.constant 0 : i32
    %c0_i32_0 = arith.constant 0 : i32
    %c0_i32_1 = arith.constant 0 : i32
    return %c0_i32, %c0_i32_0 : i32, i32
  }
  func.func @transform_5(%arg0: i32) -> (i32, i32, i32) {
    %c0_i32 = arith.constant 0 : i32
    %c0_i32_0 = arith.constant 0 : i32
    %c0_i32_1 = arith.constant 0 : i32
    return %arg0, %c0_i32, %c0_i32_0 : i32, i32, i32
  }
}

</mosaic_0001>

<llo_original>
// kernel: tpu_custom_call.1
$region0: #{tpu_custom_call.1}
  #allocation0 [shape = 'u32[]', space=smem, size = 0x4, offset = 0x4, fixed_abs, tag = 'smem constant byte address 0x4 - core index']
  #allocation1 [shape = 'u32[144,128]{1,0:T(1,128)}', space=vmem, size = 0x12000, scoped, tag = 'internal scratch']
  %s0 = inlined_call_operand.vmem [shape: f32[4,32,128], index: 0, kind: input, shape index: {}]
  %s1 = inlined_call_operand.vmem [shape: f32[32,128], index: 1, kind: input, shape index: {}]
  %s2 = inlined_call_operand.vmem [shape: f32[1,128], index: 2, kind: input, shape index: {}]
  %s3 = inlined_call_operand.vmem [shape: f32[128,32], index: 3, kind: input, shape index: {}]
  %s4 = inlined_call_operand.vmem [shape: f32[1,32], index: 4, kind: input, shape index: {}]
  %s5 = inlined_call_operand.hbm [shape: f32[4,32,128], index: 5, kind: output, shape index: {}]
  %s6 = sld [smem:[#allocation0]]
  $region53: #{tpu_custom_call.1} parent=0
    _
  %s8 = ssub.s32 1, %s6
  %s9 = scalar_select 0, %s8, %s6
  $region1: #{tpu_custom_call.1} parent=0
    #allocation2 [shape = 'u8[65536]{0}', space=vmem, size = 0x10000, scoped, tag = 'output window, operand 0']
    #allocation3 [shape = 's32[2]{0}', space=sflag, size = 0x8, scoped, tag = 'scoped memory for tpu_custom_call.1']
    %10 = vsyncpa [#allocation3], 0
    %s11 = scalar_lea.sflag [#allocation3], 1
    %12 = vsyncpa %s11, 0
    loop: start=0, step=1, limit=4
    $region2: #{tpu_custom_call.1} parent=1 // loop_pre_header
      _
    $region3: #{tpu_custom_call.1} parent=1 // loop_header
      %s14 = sphi 0, %s18
      %p15 = scmp.ge.s32.totalorder %s14, 4
      %s24 = sphi 0, %s26
      %s27 = sphi 0, %s24
      %s28 = sphi 0, %s27
      %s44 = sphi 0, %s28
      %s48 = sphi 0, %s48
      %s50 = sphi 0, %s48
      %s51 = sphi 0, %s50
      %s65 = sphi 0, %s51
      %s69 = sphi 0, %s69
      %s71 = sphi 0, %s69
      %s72 = sphi 0, %s71
      %s86 = sphi 0, %s72
      %s90 = sphi 0, %s90
      %s92 = sphi 0, %s90
      %s93 = sphi 0, %s92
      %s107 = sphi 0, %s93
      %s111 = sphi 0, %s111
      %s113 = sphi 0, %s111
      %s114 = sphi 0, %s113
      %s128 = sphi 0, %s114
      %s134 = sphi 0, %s136
      %s137 = sphi 0, %s134
      %s138 = sphi 0, %s137
      %s154 = sphi 0, %s138
    $region4: #{tpu_custom_call.1} parent=1 // loop_header_branch
      %17 = sbr.rel (%p15) target = $region8
    $region5: #{tpu_custom_call.1} parent=1 // loop_body
      %s19 = ssub.s32 %s14, 1
      %s20 = ssub.s32 %s14, 2
      %s21 = sadd.s32 %s14, 1
      %s22 = ssub.s32 %s14, %s21
      %p23 = scmp.eq.s32.totalorder %s22, 0
      %s25 = sadd.s32 %s24, 1
      %s26 = scalar_select %p23, %s24, %s25
      %p29 = pneg %p23
      %p30 = scmp.eq.s32.totalorder %s14, 1
      %p31 = por %p29, %p30
      %p32 = scmp.ne.s32.totalorder %s24, %s27
      %p33 = scmp.eq.s32.totalorder %s14, 0
      %p34 = por %p32, %p33
      %p35 = scmp.ne.s32.totalorder %s24, %s27
      %p36 = scmp.eq.s32.totalorder %s19, 1
      %p37 = por %p35, %p36
      %p38 = scmp.ne.s32.totalorder %s27, %s28
      %p39 = scmp.eq.s32.totalorder %s19, 0
      %p40 = por %p38, %p39
      %p41 = scmp.ne.s32.totalorder %s27, %s28
      %p42 = scmp.eq.s32.totalorder %s20, 1
      %p43 = por %p41, %p42
      %p45 = scmp.ne.s32.totalorder %s28, %s44
      %p46 = scmp.eq.s32.totalorder %s20, 0
      %p47 = por %p45, %p46
      %s49 = sadd.s32 %s48, 1
      %p52 = scmp.eq.s32.totalorder %s14, 1
      %p53 = scmp.ne.s32.totalorder %s48, %s50
      %p54 = scmp.eq.s32.totalorder %s14, 0
      %p55 = por %p53, %p54
      %p56 = scmp.ne.s32.totalorder %s48, %s50
      %p57 = scmp.eq.s32.totalorder %s19, 1
      %p58 = por %p56, %p57
      %p59 = scmp.ne.s32.totalorder %s50, %s51
      %p60 = scmp.eq.s32.totalorder %s19, 0
      %p61 = por %p59, %p60
      %p62 = scmp.ne.s32.totalorder %s50, %s51
      %p63 = scmp.eq.s32.totalorder %s20, 1
      %p64 = por %p62, %p63
      %p66 = scmp.ne.s32.totalorder %s51, %s65
      %p67 = scmp.eq.s32.totalorder %s20, 0
      %p68 = por %p66, %p67
      %s70 = sadd.s32 %s69, 1
      %p73 = scmp.eq.s32.totalorder %s14, 1
      %p74 = scmp.ne.s32.totalorder %s69, %s71
      %p75 = scmp.eq.s32.totalorder %s14, 0
      %p76 = por %p74, %p75
      %p77 = scmp.ne.s32.totalorder %s69, %s71
      %p78 = scmp.eq.s32.totalorder %s19, 1
      %p79 = por %p77, %p78
      %p80 = scmp.ne.s32.totalorder %s71, %s72
      %p81 = scmp.eq.s32.totalorder %s19, 0
      %p82 = por %p80, %p81
      %p83 = scmp.ne.s32.totalorder %s71, %s72
      %p84 = scmp.eq.s32.totalorder %s20, 1
      %p85 = por %p83, %p84
      %p87 = scmp.ne.s32.totalorder %s72, %s86
      %p88 = scmp.eq.s32.totalorder %s20, 0
      %p89 = por %p87, %p88
      %s91 = sadd.s32 %s90, 1
      %p94 = scmp.eq.s32.totalorder %s14, 1
      %p95 = scmp.ne.s32.totalorder %s90, %s92
      %p96 = scmp.eq.s32.totalorder %s14, 0
      %p97 = por %p95, %p96
      %p98 = scmp.ne.s32.totalorder %s90, %s92
      %p99 = scmp.eq.s32.totalorder %s19, 1
      %p100 = por %p98, %p99
      %p101 = scmp.ne.s32.totalorder %s92, %s93
      %p102 = scmp.eq.s32.totalorder %s19, 0
      %p103 = por %p101, %p102
      %p104 = scmp.ne.s32.totalorder %s92, %s93
      %p105 = scmp.eq.s32.totalorder %s20, 1
      %p106 = por %p104, %p105
      %p108 = scmp.ne.s32.totalorder %s93, %s107
      %p109 = scmp.eq.s32.totalorder %s20, 0
      %p110 = por %p108, %p109
      %s112 = sadd.s32 %s111, 1
      %p115 = scmp.eq.s32.totalorder %s14, 1
      %p116 = scmp.ne.s32.totalorder %s111, %s113
      %p117 = scmp.eq.s32.totalorder %s14, 0
      %p118 = por %p116, %p117
      %p119 = scmp.ne.s32.totalorder %s111, %s113
      %p120 = scmp.eq.s32.totalorder %s19, 1
      %p121 = por %p119, %p120
      %p122 = scmp.ne.s32.totalorder %s113, %s114
      %p123 = scmp.eq.s32.totalorder %s19, 0
      %p124 = por %p122, %p123
      %p125 = scmp.ne.s32.totalorder %s113, %s114
      %p126 = scmp.eq.s32.totalorder %s20, 1
      %p127 = por %p125, %p126
      %p129 = scmp.ne.s32.totalorder %s114, %s128
      %p130 = scmp.eq.s32.totalorder %s20, 0
      %p131 = por %p129, %p130
      %s132 = ssub.s32 %s14, %s21
      %p133 = scmp.eq.s32.totalorder %s132, 0
      %s135 = sadd.s32 %s134, 1
      %s136 = scalar_select %p133, %s134, %s135
      %p139 = pneg %p133
      %p140 = scmp.eq.s32.totalorder %s14, 1
      %p141 = por %p139, %p140
      %p142 = scmp.ne.s32.totalorder %s134, %s137
      %p143 = scmp.eq.s32.totalorder %s14, 0
      %p144 = por %p142, %p143
      %p145 = scmp.ne.s32.totalorder %s134, %s137
      %p146 = scmp.eq.s32.totalorder %s19, 1
      %p147 = por %p145, %p146
      %p148 = scmp.ne.s32.totalorder %s137, %s138
      %p149 = scmp.eq.s32.totalorder %s19, 0
      %p150 = por %p148, %p149
      %p151 = scmp.ne.s32.totalorder %s137, %s138
      %p152 = scmp.eq.s32.totalorder %s20, 1
      %p153 = por %p151, %p152
      %p155 = scmp.ne.s32.totalorder %s138, %s154
      %p156 = scmp.eq.s32.totalorder %s20, 0
      %p157 = por %p155, %p156
      %p158 = scmp.le.s32.totalorder 1, %s14
      %p159 = scmp.lt.s32.totalorder %s14, 3
      %p160 = pnand %p158, %p159
      %p161 = pneg %p160
      // Predicated region
      $region9: #{tpu_custom_call.1} parent=5 // pred_check
        _
      $region10: #{tpu_custom_call.1} parent=5 // pred_check_branch
        %163 = sbr.rel (%p160) target = $region12
      $region11: #{tpu_custom_call.1} parent=5 // pred_region
        %s164 = ssub.s32 %s14, 1
        // Predicated region
        $region13: #{tpu_custom_call.1} parent=11 // pred_check
          %p165 = pneg %p61
        $region14: #{tpu_custom_call.1} parent=11 // pred_check_branch
          %167 = sbr.rel (%p165) target = $region16
        $region15: #{tpu_custom_call.1} parent=11 // pred_region
          _
        $region16: #{tpu_custom_call.1} parent=11 // pred_fallthru
          _
        // Predicated region
        $region17: #{tpu_custom_call.1} parent=11 // pred_check
          %p168 = pneg %p82
        $region18: #{tpu_custom_call.1} parent=11 // pred_check_branch
          %170 = sbr.rel (%p168) target = $region20
        $region19: #{tpu_custom_call.1} parent=11 // pred_region
          _
        $region20: #{tpu_custom_call.1} parent=11 // pred_fallthru
          _
        // Predicated region
        $region21: #{tpu_custom_call.1} parent=11 // pred_check
          %p171 = pneg %p103
        $region22: #{tpu_custom_call.1} parent=11 // pred_check_branch
          %173 = sbr.rel (%p171) target = $region24
        $region23: #{tpu_custom_call.1} parent=11 // pred_region
          _
        $region24: #{tpu_custom_call.1} parent=11 // pred_fallthru
          _
        // Predicated region
        $region25: #{tpu_custom_call.1} parent=11 // pred_check
          %p174 = pneg %p124
        $region26: #{tpu_custom_call.1} parent=11 // pred_check_branch
          %176 = sbr.rel (%p174) target = $region28
        $region27: #{tpu_custom_call.1} parent=11 // pred_region
          _
        $region28: #{tpu_custom_call.1} parent=11 // pred_fallthru
          _
      $region12: #{tpu_custom_call.1} parent=5 // pred_fallthru
        _
      %p177 = scmp.lt.s32.totalorder %s14, 2
      // Predicated region
      $region29: #{tpu_custom_call.1} parent=5 // pred_check
        %p178 = pneg %p177
      $region30: #{tpu_custom_call.1} parent=5 // pred_check_branch
        %180 = sbr.rel (%p178) target = $region32
      $region31: #{tpu_custom_call.1} parent=5 // pred_region
        // Predicated region
        $region33: #{tpu_custom_call.1} parent=31 // pred_check
          %p181 = pneg %p34
        $region34: #{tpu_custom_call.1} parent=31 // pred_check_branch
          %183 = sbr.rel (%p181) target = $region36
        $region35: #{tpu_custom_call.1} parent=31 // pred_region
          %s184 = smul.u32 2, %s14
          %p185 = scmp.lt.s32.totalorder %s184, 3
          %s186 = scalar_select %p185, %s184, 3
          %s187 = smul.addr %s186, 4
          %s188 = smul.addr %s187, 8
          %s189 = scalar_lea.vmem %s0, %s188
          %s190 = smul.u32 2, %s14
        $region36: #{tpu_custom_call.1} parent=31 // pred_fallthru
          _
      $region32: #{tpu_custom_call.1} parent=5 // pred_fallthru
        _
      %p191 = scmp.le.s32.totalorder 1, %s14
      %p192 = scmp.lt.s32.totalorder %s14, 3
      %p193 = pnand %p191, %p192
      %p194 = pneg %p193
      // Predicated region
      $region37: #{tpu_custom_call.1} parent=5 // pred_check
        _
      $region38: #{tpu_custom_call.1} parent=5 // pred_check_branch
        %196 = sbr.rel (%p193) target = $region40
      $region39: #{tpu_custom_call.1} parent=5 // pred_region
        %s197 = ssub.s32 %s14, 1
        %s198 = smul.u32 2, %s19
        %p199 = scmp.lt.s32.totalorder %s198, 3
        %s200 = scalar_select %p199, %s198, 3
        %s201 = smul.addr %s200, 4
        %s202 = smul.addr %s201, 8
        %s203 = scalar_lea.vmem %s0, %s202
        %p204 = pneg %p40
        %p205 = pneg %p37
        %p206 = pneg %p61
        %p207 = pneg %p58
        %p208 = pneg %p82
        %p209 = pneg %p79
        %p210 = pneg %p103
        %p211 = pneg %p100
        %p212 = pneg %p124
        %p213 = pneg %p121
        %p214 = pneg %p150
        %p215 = pneg %p147
        %s216 = sand.u32 %s137, 1
        %s217 = scalar_lea.sflag [#allocation3], %s216
        %s218 = sand.u32 %s137, 1
        %s219 = smul.addr %s218, 64
        %s220 = scalar_lea.vmem [#allocation2], %s219
        %s221 = smul.u32 2, %s19
        %p222 = scmp.lt.s32.totalorder %s221, 3
        %s223 = scalar_select %p222, %s221, 3
        %s224 = smul.addr %s223, 4
        %s225 = smul.addr %s224, 8
        %s226 = scalar_lea.vmem %s0, %s225
        %s227 = smul.u32 2, %s19
        %s228 = smul.u32 2, %s19
        %v229 = vld [vmem:[%s226] sm:$0xff]
        %v230 = vld [vmem:[%s226 + $0x8] sm:$0xff]
        %v231 = vld [vmem:[%s226 + $0x10] sm:$0xff]
        %v232 = vld [vmem:[%s226 + $0x18] sm:$0xff]
        %v233 = vld [vmem:[%s226 + $0x20] sm:$0xff]
        %v234 = vld [vmem:[%s226 + $0x28] sm:$0xff]
        %v235 = vld [vmem:[%s226 + $0x30] sm:$0xff]
        %v236 = vld [vmem:[%s226 + $0x38] sm:$0xff]
        %237 = vadd.xlane.f32.xlu0 %v229
        %v238 = vpop.xlane.xlu0 %237
        %239 = vadd.xlane.f32.xlu0 %v230
        %v240 = vpop.xlane.xlu0 %239
        %241 = vadd.xlane.f32.xlu0 %v231
        %v242 = vpop.xlane.xlu0 %241
        %243 = vadd.xlane.f32.xlu0 %v232
        %v244 = vpop.xlane.xlu0 %243
        %245 = vadd.xlane.f32.xlu0 %v233
        %v246 = vpop.xlane.xlu0 %245
        %247 = vadd.xlane.f32.xlu0 %v234
        %v248 = vpop.xlane.xlu0 %247
        %249 = vadd.xlane.f32.xlu0 %v235
        %v250 = vpop.xlane.xlu0 %249
        %251 = vadd.xlane.f32.xlu0 %v236
        %v252 = vpop.xlane.xlu0 %251
        %v253 = vmul.f32 %v238, 0.0078125
        %v254 = vmul.f32 %v240, 0.0078125
        %v255 = vmul.f32 %v242, 0.0078125
        %v256 = vmul.f32 %v244, 0.0078125
        %v257 = vmul.f32 %v246, 0.0078125
        %v258 = vmul.f32 %v248, 0.0078125
        %v259 = vmul.f32 %v250, 0.0078125
        %v260 = vmul.f32 %v252, 0.0078125
        %v261 = vld [vmem:[%s1] sm:$0xff]
        %v262 = vld [vmem:[%s1 + $0x8] sm:$0xff]
        %v263 = vld [vmem:[%s1 + $0x10] sm:$0xff]
        %v264 = vld [vmem:[%s1 + $0x18] sm:$0xff]
        %v265 = vld [vmem:[%s2] sm:$0x1]
        %v267 = vlaneseq
        %v268 = vshrl.u32 %v267, 7
        %v269 = vsub.s32 0, %v268
        %v270 = vrot.slane %v265, %v269
        %v280 = vlaneseq
        %v281 = vand.u32 %v280, 127
        %v282 = vlaneseq
        %v283 = vshrl.u32 %v282, 7
        %v284 = vsub.s32 %v281, %v283
        %v285 = vrot.slane %v253, %v284
        %v286 = vadd.s32 %v281, 4294967288
        %v287 = vlaneseq
        %v288 = vshrl.u32 %v287, 7
        %v289 = vsub.s32 %v286, %v288
        %v290 = vrot.slane %v254, %v289
        %vm291 = vcmask 130112
        %v292 = vsel %vm291, %v290, %v285
        %v293 = vadd.s32 %v281, 4294967280
        %v294 = vlaneseq
        %v295 = vshrl.u32 %v294, 7
        %v296 = vsub.s32 %v293, %v295
        %v297 = vrot.slane %v255, %v296
        %vm298 = vcmask 195712
        %v299 = vsel %vm298, %v297, %v292
        %v300 = vadd.s32 %v281, 4294967272
        %v301 = vlaneseq
        %v302 = vshrl.u32 %v301, 7
        %v303 = vsub.s32 %v300, %v302
        %v304 = vrot.slane %v256, %v303
        %vm305 = vcmask 261312
        %v306 = vsel %vm305, %v304, %v299
        %v307 = vlaneseq
        %v308 = vshrl.u32 %v307, 7
        %v309 = vsub.s32 %v281, %v308
        %v310 = vrot.slane %v257, %v309
        %v311 = vlaneseq
        %v312 = vshrl.u32 %v311, 7
        %v313 = vsub.s32 %v286, %v312
        %v314 = vrot.slane %v258, %v313
        %v315 = vsel %vm291, %v314, %v310
        %v316 = vlaneseq
        %v317 = vshrl.u32 %v316, 7
        %v318 = vsub.s32 %v293, %v317
        %v319 = vrot.slane %v259, %v318
        %v320 = vsel %vm298, %v319, %v315
        %v321 = vlaneseq
        %v322 = vshrl.u32 %v321, 7
        %v323 = vsub.s32 %v300, %v322
        %v324 = vrot.slane %v260, %v323
        %v325 = vsel %vm305, %v324, %v320
        %vm326 = vcmask 1041409
        %v327 = vsel %vm326, %v325, %v306
        %vm328 = vcmask 261120
        %v329 = vsel %vm328, %v327, 0
        %331 = vmatprep.subr.mxu0 0.0
        %332 = vmatpush1.msra.mxu0 %v261
        %333 = vmatprep.subr.mxu0 0.0
        %334 = vmatpush1.msra.mxu0 %v262
        %335 = vmatprep.subr.mxu0 0.0
        %336 = vmatpush1.msra.mxu0 %v263
        %337 = vmatprep.subr.mxu0 0.0
        %338 = vmatpush1.msra.mxu0 %v264
        %339 = vmatprep.subr.mxu0 0.0
        %340 = vmatpush1.msra.mxu0 0.0
        %341 = vmatprep.subr.mxu0 0.0
        %342 = vmatpush1.msra.mxu0 0.0
        %343 = vmatprep.subr.mxu0 0.0
        %344 = vmatpush1.msra.mxu0 0.0
        %345 = vmatprep.subr.mxu0 0.0
        %346 = vmatpush1.msra.mxu0 0.0
        %347 = vmatprep.subr.mxu0 0.0
        %348 = vmatpush1.msra.mxu0 0.0
        %349 = vmatprep.subr.mxu0 0.0
        %350 = vmatpush1.msra.mxu0 0.0
        %351 = vmatprep.subr.mxu0 0.0
        %352 = vmatpush1.msra.mxu0 0.0
        %353 = vmatprep.subr.mxu0 0.0
        %354 = vmatpush1.msra.mxu0 0.0
        %355 = vmatprep.subr.mxu0 0.0
        %356 = vmatpush1.msra.mxu0 0.0
        %357 = vmatprep.subr.mxu0 0.0
        %358 = vmatpush1.msra.mxu0 0.0
        %359 = vmatprep.subr.mxu0 0.0
        %360 = vmatpush1.msra.mxu0 0.0
        %361 = vmatprep.subr.mxu0 0.0
        %362 = vmatpush1.msra.mxu0 0.0
        %363 = vmatprep.subr.mxu0 0.0
        %364 = vmatpush1.msra.mxu0 0.0
        %365 = vmatprep.subr.mxu0 0.0
        %366 = vmatpush1.msra.mxu0 0.0
        %367 = vmatprep.subr.mxu0 0.0
        %368 = vmatpush1.msra.mxu0 0.0
        %369 = vmatprep.subr.mxu0 0.0
        %370 = vmatpush1.msra.mxu0 0.0
        %371 = vmatprep.subr.mxu0 0.0
        %372 = vmatpush1.msra.mxu0 0.0
        %373 = vmatprep.subr.mxu0 0.0
        %374 = vmatpush1.msra.mxu0 0.0
        %375 = vmatprep.subr.mxu0 0.0
        %376 = vmatpush1.msra.mxu0 0.0
        %377 = vmatprep.subr.mxu0 0.0
        %378 = vmatpush1.msra.mxu0 0.0
        %379 = vmatprep.subr.mxu0 0.0
        %380 = vmatpush1.msra.mxu0 0.0
        %381 = vmatprep.subr.mxu0 0.0
        %382 = vmatpush1.msra.mxu0 0.0
        %383 = vmatprep.subr.mxu0 0.0
        %384 = vmatpush1.msra.mxu0 0.0
        %385 = vmatprep.subr.mxu0 0.0
        %386 = vmatpush1.msra.mxu0 0.0
        %387 = vmatprep.subr.mxu0 0.0
        %388 = vmatpush1.msra.mxu0 0.0
        %389 = vmatprep.subr.mxu0 0.0
        %390 = vmatpush1.msra.mxu0 0.0
        %391 = vmatprep.subr.mxu0 0.0
        %392 = vmatpush1.msra.mxu0 0.0
        %393 = vmatprep.subr.mxu0 0.0
        %394 = vmatpush1.msra.mxu0 0.0
        %395 = vmatprep.mubr.f32.mxu0 0.0
        %396 = vmatmul.mubr.f32.gmra.mrb[0].mxu0 %v329
        %v397 = vpop.f32.mrb[0].mxu0
        %v398 = vadd.f32 %v270, %v397
        %v399 = vpop.f32.mrb[0].mxu0
        %400 = vdwg.mxu0
        %v401 = vmax.f32 %v398, 0.0
        %v402 = vld [vmem:[%s3] sm:$0xff]
        %v403 = vld [vmem:[%s3 + $0x8] sm:$0xff]
        %v404 = vld [vmem:[%s3 + $0x10] sm:$0xff]
        %v405 = vld [vmem:[%s3 + $0x18] sm:$0xff]
        %v406 = vld [vmem:[%s3 + $0x20] sm:$0xff]
        %v407 = vld [vmem:[%s3 + $0x28] sm:$0xff]
        %v408 = vld [vmem:[%s3 + $0x30] sm:$0xff]
        %v409 = vld [vmem:[%s3 + $0x38] sm:$0xff]
        %v410 = vld [vmem:[%s3 + $0x40] sm:$0xff]
        %v411 = vld [vmem:[%s3 + $0x48] sm:$0xff]
        %v412 = vld [vmem:[%s3 + $0x50] sm:$0xff]
        %v413 = vld [vmem:[%s3 + $0x58] sm:$0xff]
        %v414 = vld [vmem:[%s3 + $0x60] sm:$0xff]
        %v415 = vld [vmem:[%s3 + $0x68] sm:$0xff]
        %v416 = vld [vmem:[%s3 + $0x70] sm:$0xff]
        %v417 = vld [vmem:[%s3 + $0x78] sm:$0xff]
        %v418 = vld [vmem:[%s4] sm:$0x1]
        %v420 = vlaneseq
        %v421 = vshrl.u32 %v420, 7
        %v422 = vsub.s32 0, %v421
        %v423 = vrot.slane %v418, %v422
        %425 = vmatprep.subr.mxu0 0.0
        %426 = vmatpush1.msra.mxu0 %v402
        %427 = vmatprep.subr.mxu0 0.0
        %428 = vmatpush1.msra.mxu0 %v403
        %429 = vmatprep.subr.mxu0 0.0
        %430 = vmatpush1.msra.mxu0 %v404
        %431 = vmatprep.subr.mxu0 0.0
        %432 = vmatpush1.msra.mxu0 %v405
        %433 = vmatprep.subr.mxu0 0.0
        %434 = vmatpush1.msra.mxu0 %v406
        %435 = vmatprep.subr.mxu0 0.0
        %436 = vmatpush1.msra.mxu0 %v407
        %437 = vmatprep.subr.mxu0 0.0
        %438 = vmatpush1.msra.mxu0 %v408
        %439 = vmatprep.subr.mxu0 0.0
        %440 = vmatpush1.msra.mxu0 %v409
        %441 = vmatprep.subr.mxu0 0.0
        %442 = vmatpush1.msra.mxu0 %v410
        %443 = vmatprep.subr.mxu0 0.0
        %444 = vmatpush1.msra.mxu0 %v411
        %445 = vmatprep.subr.mxu0 0.0
        %446 = vmatpush1.msra.mxu0 %v412
        %447 = vmatprep.subr.mxu0 0.0
        %448 = vmatpush1.msra.mxu0 %v413
        %449 = vmatprep.subr.mxu0 0.0
        %450 = vmatpush1.msra.mxu0 %v414
        %451 = vmatprep.subr.mxu0 0.0
        %452 = vmatpush1.msra.mxu0 %v415
        %453 = vmatprep.subr.mxu0 0.0
        %454 = vmatpush1.msra.mxu0 %v416
        %455 = vmatprep.subr.mxu0 0.0
        %456 = vmatpush1.msra.mxu0 %v417
        %457 = vmatprep.subr.mxu0 0.0
        %458 = vmatpush1.msra.mxu0 0.0
        %459 = vmatprep.subr.mxu0 0.0
        %460 = vmatpush1.msra.mxu0 0.0
        %461 = vmatprep.subr.mxu0 0.0
        %462 = vmatpush1.msra.mxu0 0.0
        %463 = vmatprep.subr.mxu0 0.0
        %464 = vmatpush1.msra.mxu0 0.0
        %465 = vmatprep.subr.mxu0 0.0
        %466 = vmatpush1.msra.mxu0 0.0
        %467 = vmatprep.subr.mxu0 0.0
        %468 = vmatpush1.msra.mxu0 0.0
        %469 = vmatprep.subr.mxu0 0.0
        %470 = vmatpush1.msra.mxu0 0.0
        %471 = vmatprep.subr.mxu0 0.0
        %472 = vmatpush1.msra.mxu0 0.0
        %473 = vmatprep.subr.mxu0 0.0
        %474 = vmatpush1.msra.mxu0 0.0
        %475 = vmatprep.subr.mxu0 0.0
        %476 = vmatpush1.msra.mxu0 0.0
        %477 = vmatprep.subr.mxu0 0.0
        %478 = vmatpush1.msra.mxu0 0.0
        %479 = vmatprep.subr.mxu0 0.0
        %480 = vmatpush1.msra.mxu0 0.0
        %481 = vmatprep.subr.mxu0 0.0
        %482 = vmatpush1.msra.mxu0 0.0
        %483 = vmatprep.subr.mxu0 0.0
        %484 = vmatpush1.msra.mxu0 0.0
        %485 = vmatprep.subr.mxu0 0.0
        %486 = vmatpush1.msra.mxu0 0.0
        %487 = vmatprep.subr.mxu0 0.0
        %488 = vmatpush1.msra.mxu0 0.0
        %489 = vmatprep.mubr.f32.mxu0 0.0
        %490 = vmatmul.mubr.f32.gmra.mrb[0].mxu0 %v401
        %v491 = vpop.f32.mrb[0].mxu0
        %v492 = vadd.f32 %v423, %v491
        %v493 = vpop.f32.mrb[0].mxu0
        %494 = vdwg.mxu0
        %v495 = vxor.u32 %v492, 2147483648
        %v496 = vmul.f32 %v495, 1.442695
        %v497 = vpow.pop %v496
        %v498 = vadd.f32 %v497, 1.0
        %v499 = vrcp.pop %v498
        %v500 = vmul.f32 1.0, %v499
        %v501 = vlaneseq
        %v502 = vshrl.u32 %v501, 7
        %v503 = vsub.s32 0, %v502
        %v504 = vrot.slane %v500, %v503
        %506 = vbcast.lane.b32.xlu0 %v504, 256
        %v507 = vpop.permute.xlu0 %506
        %s509 = sor.u32 256, 8
        %510 = vbcast.lane.b32.xlu0 %v504, %s509
        %v511 = vpop.permute.xlu0 %510
        %s513 = sor.u32 256, 16
        %514 = vbcast.lane.b32.xlu0 %v504, %s513
        %v515 = vpop.permute.xlu0 %514
        %s517 = sor.u32 256, 24
        %518 = vbcast.lane.b32.xlu0 %v504, %s517
        %v519 = vpop.permute.xlu0 %518
        %v520 = vlaneseq
        %v521 = vshrl.u32 %v520, 7
        %v522 = vsub.s32 1, %v521
        %v523 = vrot.slane %v500, %v522
        %525 = vbcast.lane.b32.xlu0 %v523, 256
        %v526 = vpop.permute.xlu0 %525
        %s528 = sor.u32 256, 8
        %529 = vbcast.lane.b32.xlu0 %v523, %s528
        %v530 = vpop.permute.xlu0 %529
        %s532 = sor.u32 256, 16
        %533 = vbcast.lane.b32.xlu0 %v523, %s532
        %v534 = vpop.permute.xlu0 %533
        %s536 = sor.u32 256, 24
        %537 = vbcast.lane.b32.xlu0 %v523, %s536
        %v538 = vpop.permute.xlu0 %537
        %v539 = vmul.f32 %v229, %v507
        %v540 = vmul.f32 %v230, %v511
        %v541 = vmul.f32 %v231, %v515
        %v542 = vmul.f32 %v232, %v519
        %v543 = vmul.f32 %v233, %v526
        %v544 = vmul.f32 %v234, %v530
        %v545 = vmul.f32 %v235, %v534
        %v546 = vmul.f32 %v236, %v538
        %547 = vst [vmem:[%s220] sm:$0xff] %v539
        %548 = vst [vmem:[%s220 + $0x8] sm:$0xff] %v540
        %549 = vst [vmem:[%s220 + $0x10] sm:$0xff] %v541
        %550 = vst [vmem:[%s220 + $0x18] sm:$0xff] %v542
        %551 = vst [vmem:[%s220 + $0x20] sm:$0xff] %v543
        %552 = vst [vmem:[%s220 + $0x28] sm:$0xff] %v544
        %553 = vst [vmem:[%s220 + $0x30] sm:$0xff] %v545
        %554 = vst [vmem:[%s220 + $0x38] sm:$0xff] %v546
        %s555 = sand.u32 %s137, 1
        %s556 = scalar_lea.sflag [#allocation3], %s555
        %s557 = sand.u32 %s137, 1
        %s558 = smul.addr %s557, 64
        %s559 = scalar_lea.vmem [#allocation2], %s558
        // Predicated region
        $region41: #{tpu_custom_call.1} parent=39 // pred_check
          %p560 = pneg %p147
        $region42: #{tpu_custom_call.1} parent=39 // pred_check_branch
          %562 = sbr.rel (%p560) target = $region44
        $region43: #{tpu_custom_call.1} parent=39 // pred_region
          %s563 = smul.u32 2, %s19
          %s565 = ssub.s32 1024, 1024
          %566 = vsyncadd %s556, %s565
          %s567 = smul.addr %s563, 4
          %s568 = smul.addr %s567, 128
          %s569 = scalar_lea.hbm %s5, %s568
          %s570 = sshll.u32 %s559, 4
          %s571 = int_to_ptr.vmem [resolvable:$true] %s570
          %576 = dma.vmem_to_hbm [thread:$0]  %s571, 1024, %s569, %s556, 128, 128, 8
        $region44: #{tpu_custom_call.1} parent=39 // pred_fallthru
          _
      $region40: #{tpu_custom_call.1} parent=5 // pred_fallthru
        _
      %p577 = scmp.le.s32.totalorder 2, %s14
      // Predicated region
      $region45: #{tpu_custom_call.1} parent=5 // pred_check
        %p578 = pneg %p577
      $region46: #{tpu_custom_call.1} parent=5 // pred_check_branch
        %580 = sbr.rel (%p578) target = $region48
      $region47: #{tpu_custom_call.1} parent=5 // pred_region
        %s581 = ssub.s32 %s14, 2
        // Predicated region
        $region49: #{tpu_custom_call.1} parent=47 // pred_check
          %p582 = pneg %p153
        $region50: #{tpu_custom_call.1} parent=47 // pred_check_branch
          %584 = sbr.rel (%p582) target = $region52
        $region51: #{tpu_custom_call.1} parent=47 // pred_region
          %s585 = sand.u32 %s138, 1
          %s586 = scalar_lea.sflag [#allocation3], %s585
          %s587 = sand.u32 %s138, 1
          %s588 = smul.addr %s587, 64
          %s589 = scalar_lea.vmem [#allocation2], %s588
          %590 = dma.done %s586, 1024
        $region52: #{tpu_custom_call.1} parent=47 // pred_fallthru
          _
      $region48: #{tpu_custom_call.1} parent=5 // pred_fallthru
        _
    $region6: #{tpu_custom_call.1} parent=1 // loop_footer
      %s18 = sadd.s32 1, %s14
    $region7: #{tpu_custom_call.1} parent=1 // loop_footer_branch
      %13 = sbr.rel target = $region3
    $region8: #{tpu_custom_call.1} parent=1 // loop_exit
      _
    %591 = vsyncpa [#allocation3], 1
    %s592 = scalar_lea.sflag [#allocation3], 1
    %593 = vsyncpa %s592, 1

</llo_original>
